<compile_context>
chip_gen: v7x
topology: tpu7x:2x2x1
jax: 0.10.0
libtpu: 0.0.40
codegen_flags: <defaults>
</compile_context>

<pallas_src>
import jax
import jax.numpy as jnp
from jax import lax
from jax.experimental import pallas as pl
from jax.experimental.pallas import tpu as pltpu


COLS = 512                      # lane-dense last dim (multiple of 128)
MAX_ROW_TILE = 2048             # 4 MiB f32 per input block
VMEM_LIMIT_BYTES = 40 * 1024 * 1024


def _default_ncore():
    """Best-effort: 2 for chips with 2 TensorCores per device, else 1."""
    try:
        kind = jax.devices()[0].device_kind.lower()
    except Exception:
        return 1
    if ("v4" in kind) or ("v5p" in kind) or ("7x" in kind):
        return 2
    return 1


# ---------------------------------------------------------------------------
# Wrapper reproducing VAELoss.forward semantics.
#   reconstruction_loss = H * W * mse_loss(inputs, outputs)       (mean-reduce)
#   kl_divergence = -0.5 * mean_b( sum_d(1 + log_var - mean^2 - exp(log_var)) )
#   loss = reconstruction_loss + kl_divergence
# ---------------------------------------------------------------------------
def vae_loss(inputs, mean, log_var, outputs):
    B, C, H, W = outputs.shape
    n_elem = B * C * H * W
    Bl, D = mean.shape

    # Lane-dense flatten: contiguous reshape to (rows, COLS).  Only pad when
    # n_elem is not already a multiple of COLS (rare for NCHW sizes).
    x_flat = inputs.reshape(-1)
    y_flat = outputs.reshape(-1)
    pad = (-n_elem) % COLS
    if pad:
        x_flat = jnp.pad(x_flat, (0, pad))
        y_flat = jnp.pad(y_flat, (0, pad))
    rows = (n_elem + pad) // COLS
    x2d = x_flat.reshape(rows, COLS)
    y2d = y_flat.reshape(rows, COLS)

    # Tiling: biggest block that fits; if everything fits in one block, make
    # the block exactly the array (allowed even when not a multiple of 8).
    row_tile = rows if rows <= MAX_ROW_TILE else MAX_ROW_TILE
    num_blocks = pl.cdiv(rows, row_tile)

    ncore = min(_default_ncore(), num_blocks)
    steps = pl.cdiv(num_blocks, ncore)

    last_block_partial = (num_blocks * row_tile != rows)
    has_phantom = (ncore * steps != num_blocks)    # core axis overshoot
    needs_mask = last_block_partial or has_phantom
    # first block index from which row-masking is required
    first_masked_b = (num_blocks - 1) if last_block_partial else num_blocks

    acc_rows = 8 if (row_tile % 8 == 0) else row_tile

    # -----------------------------------------------------------------------
    # Fused kernel:
    #   grid = (ncore, steps); inputs: x2d/y2d tiles (row_tile, COLS),
    #   mean/log_var full blocks; outputs: one (8,128) block per core for the
    #   SSE partial and for the KL sum; scratch: small (acc_rows, COLS) f32.
    # -----------------------------------------------------------------------
    def kernel(x_ref, y_ref, m_ref, lv_ref, sse_ref, kl_ref, acc_ref):
        c = pl.program_id(0)
        i = pl.program_id(1)

        @pl.when(i == 0)
        def _():
            acc_ref[...] = jnp.zeros_like(acc_ref)

        d = x_ref[...].astype(jnp.float32) - y_ref[...].astype(jnp.float32)
        d2 = d * d

        def accumulate(vals):
            if row_tile % 8 == 0:
                # Pure VPU: fold groups of 8 rows (one vreg of sublanes each)
                # into the 16 KiB resident accumulator.
                acc_ref[...] += vals.reshape(row_tile // 8, 8, COLS).sum(axis=0)
            else:
                # Tiny single-block case (row_tile == rows, not a multiple of 8).
                acc_ref[...] += vals

        if needs_mask:
            b = c * steps + i

            @pl.when(b < first_masked_b)
            def _():
                accumulate(d2)

            @pl.when(b >= first_masked_b)
            def _():
                # Tail / phantom tile: OOB rows are unspecified -> mask them.
                row_base = b * row_tile
                row_ids = row_base + lax.broadcasted_iota(jnp.int32, d2.shape, 0)
                accumulate(jnp.where(row_ids < rows, d2, 0.0))
        else:
            accumulate(d2)

        @pl.when(i == pl.num_programs(1) - 1)
        def _():
            # One XLU reduce per core over the small accumulator.
            total = jnp.sum(acc_ref[...])
            sse_ref[...] = jnp.full(sse_ref.shape, total, sse_ref.dtype)

            # KL term: sum_{b,d}(1 + log_var - mean^2 - exp(log_var)).
            # Tiny (B, D) tensor; each core computes it redundantly, the
            # wrapper reads core 0's block.
            m = m_ref[...].astype(jnp.float32)
            lv = lv_ref[...].astype(jnp.float32)
            kl = jnp.sum(1.0 + lv - m * m - jnp.exp(lv))
            kl_ref[...] = jnp.full(kl_ref.shape, kl, kl_ref.dtype)

    def xy_map(c, i):
        b = c * steps + i
        if has_phantom:
            # Clamp so phantom steps re-fetch the last real block (its
            # contribution is fully masked out in-kernel).
            b = jnp.minimum(b, num_blocks - 1)
        return (b, 0)

    sse_out, kl_out = pl.pallas_call(
        kernel,
        out_shape=(
            jax.ShapeDtypeStruct((ncore * 8, 128), jnp.float32),  # per-core SSE
            jax.ShapeDtypeStruct((ncore * 8, 128), jnp.float32),  # KL sum
        ),
        grid_spec=pltpu.PrefetchScalarGridSpec(
            num_scalar_prefetch=0,
            grid=(ncore, steps),
            in_specs=[
                pl.BlockSpec((row_tile, COLS), xy_map),
                pl.BlockSpec((row_tile, COLS), xy_map),
                pl.BlockSpec((Bl, D), lambda c, i: (0, 0)),
                pl.BlockSpec((Bl, D), lambda c, i: (0, 0)),
            ],
            out_specs=(
                pl.BlockSpec((8, 128), lambda c, i: (c, 0)),
                pl.BlockSpec((8, 128), lambda c, i: (c, 0)),
            ),
            scratch_shapes=[pltpu.VMEM((acc_rows, COLS), jnp.float32)],
        ),
        compiler_params=pltpu.CompilerParams(
            dimension_semantics=("parallel", "arbitrary"),
            vmem_limit_bytes=VMEM_LIMIT_BYTES,
        ),
        cost_estimate=pl.CostEstimate(
            flops=4 * rows * COLS + 4 * Bl * D,
            transcendentals=Bl * D,
            bytes_accessed=2 * 4 * rows * COLS + 2 * 4 * Bl * D,
        ),
    )(x2d, y2d, mean, log_var)

    sse = jnp.sum(sse_out[::8, 0])     # add the per-core partials
    kl_total = kl_out[0, 0]

    reconstruction_loss = (H * W) * (sse / jnp.float32(n_elem))
    kl_divergence = -0.5 * (kl_total / jnp.float32(Bl))
    loss = reconstruction_loss + kl_divergence
    return dict(
        reconstruction_loss=reconstruction_loss,
        kl_divergence=kl_divergence,
        loss=loss,
    )


if __name__ == "__main__":
    key = jax.random.PRNGKey(0)
    k1, k2, k3, k4 = jax.random.split(key, 4)

    B, C, H, W = 2, 4, 16, 16
    D = 32  # latent dim

    inputs = jax.random.normal(k1, (B, C, H, W), dtype=jnp.float32)
    outputs = jax.random.normal(k2, (B, C, H, W), dtype=jnp.float32)
    mean = jax.random.normal(k3, (B, D), dtype=jnp.float32)
    log_var = 0.1 * jax.random.normal(k4, (B, D), dtype=jnp.float32)

    result = vae_loss(inputs, mean, log_var, outputs)
    jax.block_until_ready(result)

    # Pure-JAX reference check (same semantics as the PyTorch module).
    ref_recon = H * W * jnp.mean((inputs - outputs) ** 2)
    ref_kl = -0.5 * jnp.mean(
        jnp.sum(1.0 + log_var - mean ** 2 - jnp.exp(log_var), axis=1))
    assert jnp.allclose(result["reconstruction_loss"], ref_recon, rtol=1e-5, atol=1e-5)
    assert jnp.allclose(result["kl_divergence"], ref_kl, rtol=1e-5, atol=1e-5)
    assert jnp.allclose(result["loss"], ref_recon + ref_kl, rtol=1e-5, atol=1e-5)

    print("KERNEL_OK")
</pallas_src>

<mosaic_0001>
module attributes {stable_mosaic.version = 11 : i64} {
  func.func @kernel(%arg0: i32, %arg1: i32, %arg2: memref<4x512xf32, #tpu.memory_space<vmem>>, %arg3: memref<4x512xf32, #tpu.memory_space<vmem>>, %arg4: memref<2x32xf32, #tpu.memory_space<vmem>>, %arg5: memref<2x32xf32, #tpu.memory_space<vmem>>, %arg6: memref<8x128xf32, #tpu.memory_space<vmem>>, %arg7: memref<8x128xf32, #tpu.memory_space<vmem>>, %arg8: memref<4x512xf32, #tpu.memory_space<vmem>>) attributes {dimension_semantics = [#tpu.dimension_semantics<parallel>, #tpu.dimension_semantics<arbitrary>], iteration_bounds = array<i64: 1, 1>, scalar_prefetch = 0 : i64, scratch_operands = 1 : i64, tpu.core_type = #tpu.core_type<tc>, window_params = [{transform_indices = @transform_0, window_bounds = array<i64: 4, 512>}, {transform_indices = @transform_1, window_bounds = array<i64: 4, 512>}, {pipeline_mode = #tpu.pipeline_mode<synchronous>, transform_indices = @transform_2, window_bounds = array<i64: 2, 32>}, {pipeline_mode = #tpu.pipeline_mode<synchronous>, transform_indices = @transform_3, window_bounds = array<i64: 2, 32>}, {transform_indices = @transform_4, window_bounds = array<i64: 8, 128>}, {transform_indices = @transform_5, window_bounds = array<i64: 8, 128>}]} {
    %c0_i32 = arith.constant 0 : i32
    %0 = arith.cmpi eq, %arg1, %c0_i32 : i32
    %1 = arith.extui %0 : i1 to i32
    %c0_i32_0 = arith.constant 0 : i32
    %2 = arith.cmpi ne, %1, %c0_i32_0 : i32
    scf.if %2 {
      %cst = arith.constant 0.000000e+00 : f32
      %13 = vector.broadcast %cst : f32 to vector<4x512xf32>
      %c0_10 = arith.constant 0 : index
      %c0_11 = arith.constant 0 : index
      %14 = vector.load %arg8[%c0_10, %c0_11] : memref<4x512xf32, #tpu.memory_space<vmem>>, vector<4x512xf32>
      tpu.vector_store %arg8[%c0_10, %c0_11], %13 {strides = array<i32>} : memref<4x512xf32, #tpu.memory_space<vmem>>, vector<4x512xf32>,
    } else {
    }
    %c0 = arith.constant 0 : index
    %c0_1 = arith.constant 0 : index
    %3 = vector.load %arg2[%c0, %c0_1] : memref<4x512xf32, #tpu.memory_space<vmem>>, vector<4x512xf32>
    %c0_2 = arith.constant 0 : index
    %c0_3 = arith.constant 0 : index
    %4 = vector.load %arg3[%c0_2, %c0_3] : memref<4x512xf32, #tpu.memory_space<vmem>>, vector<4x512xf32>
    %5 = arith.subf %3, %4 : vector<4x512xf32>
    %6 = arith.mulf %5, %5 : vector<4x512xf32>
    %c0_4 = arith.constant 0 : index
    %c0_5 = arith.constant 0 : index
    %7 = vector.load %arg8[%c0_4, %c0_5] : memref<4x512xf32, #tpu.memory_space<vmem>>, vector<4x512xf32>
    %8 = arith.addf %7, %6 : vector<4x512xf32>
    %c0_6 = arith.constant 0 : index
    %c0_7 = arith.constant 0 : index
    %9 = vector.load %arg8[%c0_6, %c0_7] : memref<4x512xf32, #tpu.memory_space<vmem>>, vector<4x512xf32>
    tpu.vector_store %arg8[%c0_6, %c0_7], %8 {strides = array<i32>} : memref<4x512xf32, #tpu.memory_space<vmem>>, vector<4x512xf32>,
    %c0_i32_8 = arith.constant 0 : i32
    %10 = arith.cmpi eq, %arg1, %c0_i32_8 : i32
    %11 = arith.extui %10 : i1 to i32
    %c0_i32_9 = arith.constant 0 : i32
    %12 = arith.cmpi ne, %11, %c0_i32_9 : i32
    scf.if %12 {
      %c0_10 = arith.constant 0 : index
      %c0_11 = arith.constant 0 : index
      %13 = vector.load %arg8[%c0_10, %c0_11] : memref<4x512xf32, #tpu.memory_space<vmem>>, vector<4x512xf32>
      %14 = vector.shape_cast %13 : vector<4x512xf32> to vector<1x4x512xf32>
      %cst = arith.constant dense<0.000000e+00> : vector<1xf32>
      %15 = vector.multi_reduction <add>, %14, %cst [1, 2] : vector<1x4x512xf32> to vector<1xf32>
      %16 = vector.shape_cast %15 : vector<1xf32> to vector<1x1x1xf32>
      %17 = vector.extract %16[0, 0, 0] : f32 from vector<1x1x1xf32>
      %18 = vector.broadcast %17 : f32 to vector<8x128xf32>
      %c0_12 = arith.constant 0 : index
      %c0_13 = arith.constant 0 : index
      %19 = vector.load %arg6[%c0_12, %c0_13] : memref<8x128xf32, #tpu.memory_space<vmem>>, vector<8x128xf32>
      tpu.vector_store %arg6[%c0_12, %c0_13], %18 {strides = array<i32>} : memref<8x128xf32, #tpu.memory_space<vmem>>, vector<8x128xf32>,
      %c0_14 = arith.constant 0 : index
      %c0_15 = arith.constant 0 : index
      %20 = vector.load %arg4[%c0_14, %c0_15] : memref<2x32xf32, #tpu.memory_space<vmem>>, vector<2x32xf32>
      %c0_16 = arith.constant 0 : index
      %c0_17 = arith.constant 0 : index
      %21 = vector.load %arg5[%c0_16, %c0_17] : memref<2x32xf32, #tpu.memory_space<vmem>>, vector<2x32xf32>
      %cst_18 = arith.constant 1.000000e+00 : f32
      %22 = vector.broadcast %cst_18 : f32 to vector<2x32xf32>
      %23 = arith.addf %22, %21 : vector<2x32xf32>
      %24 = arith.mulf %20, %20 : vector<2x32xf32>
      %25 = arith.subf %23, %24 : vector<2x32xf32>
      %26 = math.exp %21 : vector<2x32xf32>
      %27 = arith.subf %25, %26 : vector<2x32xf32>
      %28 = vector.shape_cast %27 : vector<2x32xf32> to vector<1x2x32xf32>
      %cst_19 = arith.constant dense<0.000000e+00> : vector<1xf32>
      %29 = vector.multi_reduction <add>, %28, %cst_19 [1, 2] : vector<1x2x32xf32> to vector<1xf32>
      %30 = vector.shape_cast %29 : vector<1xf32> to vector<1x1x1xf32>
      %31 = vector.extract %30[0, 0, 0] : f32 from vector<1x1x1xf32>
      %32 = vector.broadcast %31 : f32 to vector<8x128xf32>
      %c0_20 = arith.constant 0 : index
      %c0_21 = arith.constant 0 : index
      %33 = vector.load %arg7[%c0_20, %c0_21] : memref<8x128xf32, #tpu.memory_space<vmem>>, vector<8x128xf32>
      tpu.vector_store %arg7[%c0_20, %c0_21], %32 {strides = array<i32>} : memref<8x128xf32, #tpu.memory_space<vmem>>, vector<8x128xf32>,
    } else {
    }
    return
  }
  func.func @transform_0(%arg0: i32, %arg1: i32) -> (i32, i32) {
    %c1_i32 = arith.constant 1 : i32
    %0 = arith.muli %arg0, %c1_i32 : i32
    %1 = arith.addi %0, %arg1 : i32
    %c0_i32 = arith.constant 0 : i32
    %c0_i32_0 = arith.constant 0 : i32
    return %1, %c0_i32 : i32, i32
  }
  func.func @transform_1(%arg0: i32, %arg1: i32) -> (i32, i32) {
    %c1_i32 = arith.constant 1 : i32
    %0 = arith.muli %arg0, %c1_i32 : i32
    %1 = arith.addi %0, %arg1 : i32
    %c0_i32 = arith.constant 0 : i32
    %c0_i32_0 = arith.constant 0 : i32
    return %1, %c0_i32 : i32, i32
  }
  func.func @transform_2(%arg0: i32, %arg1: i32) -> (i32, i32) {
    %c0_i32 = arith.constant 0 : i32
    %c0_i32_0 = arith.constant 0 : i32
    %c0_i32_1 = arith.constant 0 : i32
    return %c0_i32, %c0_i32_0 : i32, i32
  }
  func.func @transform_3(%arg0: i32, %arg1: i32) -> (i32, i32) {
    %c0_i32 = arith.constant 0 : i32
    %c0_i32_0 = arith.constant 0 : i32
    %c0_i32_1 = arith.constant 0 : i32
    return %c0_i32, %c0_i32_0 : i32, i32
  }
  func.func @transform_4(%arg0: i32, %arg1: i32) -> (i32, i32) {
    %c0_i32 = arith.constant 0 : i32
    %c0_i32_0 = arith.constant 0 : i32
    return %arg0, %c0_i32 : i32, i32
  }
  func.func @transform_5(%arg0: i32, %arg1: i32) -> (i32, i32) {
    %c0_i32 = arith.constant 0 : i32
    %c0_i32_0 = arith.constant 0 : i32
    return %arg0, %c0_i32 : i32, i32
  }
}

</mosaic_0001>

<llo_original>
// kernel: tpu_custom_call.1
$region0: #{tpu_custom_call.1}
  #allocation0 [shape = 'u32[]', space=smem, size = 0x4, offset = 0x4, fixed_abs, tag = 'smem constant byte address 0x4 - core index']
  #allocation1 [shape = 'u32[144,128]{1,0:T(1,128)}', space=vmem, size = 0x12000, scoped, tag = 'internal scratch']
  #allocation2 [shape = 'f32[4,512]{1,0:T(4,128)}', space=vmem, size = 0x2000, scoped, tag = 'scratch operand']
  %s0 = inlined_call_operand.hbm [shape: f32[4,512], index: 0, kind: input, shape index: {}]
  %s1 = inlined_call_operand.hbm [shape: f32[4,512], index: 1, kind: input, shape index: {}]
  %s2 = inlined_call_operand.vmem [shape: f32[2,32], index: 2, kind: input, shape index: {}]
  %s3 = inlined_call_operand.vmem [shape: f32[2,32], index: 3, kind: input, shape index: {}]
  %s4 = inlined_call_operand.hbm [shape: f32[8,128], index: 4, kind: output, shape index: {0}]
  %s5 = inlined_call_operand.hbm [shape: f32[8,128], index: 5, kind: output, shape index: {1}]
  %6 = xla_tuple %s4, %s5
  %s7 = sld [smem:[#allocation0]]
  $region50: #{tpu_custom_call.1} parent=0
    _
  %s9 = ssub.s32 1, %s7
  %s10 = scalar_select 0, %s9, %s7
  $region1: #{tpu_custom_call.1} parent=0
    #allocation3 [shape = 'u8[8192]{0}', space=vmem, size = 0x2000, scoped, tag = 'input window, operand 0, single buffered']
    #allocation4 [shape = 's32[1]{0}', space=sflag, size = 0x4, scoped, tag = 'scoped memory for tpu_custom_call.1']
    #allocation5 [shape = 's32[1]{0}', space=sflag, size = 0x4, scoped, tag = 'scoped memory for tpu_custom_call.1']
    #allocation6 [shape = 'u8[8192]{0}', space=vmem, size = 0x2000, scoped, tag = 'input window, operand 1, single buffered']
    #allocation7 [shape = 's32[1]{0}', space=sflag, size = 0x4, scoped, tag = 'scoped memory for tpu_custom_call.1']
    #allocation8 [shape = 'u8[4096]{0}', space=vmem, size = 0x1000, scoped, tag = 'output window, operand 0, single buffered']
    #allocation9 [shape = 'u8[4096]{0}', space=vmem, size = 0x1000, scoped, tag = 'output window, operand 1, single buffered']
    #allocation10 [shape = 's32[1]{0}', space=sflag, size = 0x4, scoped, tag = 'scoped memory for tpu_custom_call.1']
    %11 = vsyncpa [#allocation4], 0
    %12 = vsyncpa [#allocation7], 0
    %13 = vsyncpa [#allocation5], 0
    %14 = vsyncpa [#allocation10], 0
    // Predicated region
    $region2: #{tpu_custom_call.1} parent=1 // pred_check
      _
    $region3: #{tpu_custom_call.1} parent=1 // pred_check_branch
      %16 = sbr.rel (0) target = $region5
    $region4: #{tpu_custom_call.1} parent=1 // pred_region
      %s17 = sadd.s32 0, 0
      %s19 = ssub.s32 256, 256
      %20 = vsyncadd [#allocation4], %s19
      %s21 = smul.addr %s17, 4
      %s22 = smul.addr %s21, 64
      %s23 = scalar_lea.hbm %s0, %s22
      %s25 = sshll.u32 [#allocation3], 4
      %s26 = int_to_ptr.vmem [resolvable:$true] %s25
      %28 = dma.hbm_to_vmem [thread:$0]  %s23, 256, %s26, [#allocation4]
    $region5: #{tpu_custom_call.1} parent=1 // pred_fallthru
      _
    // Predicated region
    $region6: #{tpu_custom_call.1} parent=1 // pred_check
      _
    $region7: #{tpu_custom_call.1} parent=1 // pred_check_branch
      %30 = sbr.rel (0) target = $region9
    $region8: #{tpu_custom_call.1} parent=1 // pred_region
      %s31 = sadd.s32 0, 0
      %s33 = ssub.s32 256, 256
      %34 = vsyncadd [#allocation7], %s33
      %s35 = smul.addr %s31, 4
      %s36 = smul.addr %s35, 64
      %s37 = scalar_lea.hbm %s1, %s36
      %s39 = sshll.u32 [#allocation6], 4
      %s40 = int_to_ptr.vmem [resolvable:$true] %s39
      %42 = dma.hbm_to_vmem [thread:$0]  %s37, 256, %s40, [#allocation7]
    $region9: #{tpu_custom_call.1} parent=1 // pred_fallthru
      _
    // Predicated region
    $region10: #{tpu_custom_call.1} parent=1 // pred_check
      _
    $region11: #{tpu_custom_call.1} parent=1 // pred_check_branch
      %44 = sbr.rel (0) target = $region13
    $region12: #{tpu_custom_call.1} parent=1 // pred_region
      _
    $region13: #{tpu_custom_call.1} parent=1 // pred_fallthru
      _
    // Predicated region
    $region14: #{tpu_custom_call.1} parent=1 // pred_check
      _
    $region15: #{tpu_custom_call.1} parent=1 // pred_check_branch
      %46 = sbr.rel (0) target = $region17
    $region16: #{tpu_custom_call.1} parent=1 // pred_region
      _
    $region17: #{tpu_custom_call.1} parent=1 // pred_fallthru
      _
    // Predicated region
    $region18: #{tpu_custom_call.1} parent=1 // pred_check
      _
    $region19: #{tpu_custom_call.1} parent=1 // pred_check_branch
      %48 = sbr.rel (0) target = $region21
    $region20: #{tpu_custom_call.1} parent=1 // pred_region
      %49 = dma.done [#allocation4], 256
    $region21: #{tpu_custom_call.1} parent=1 // pred_fallthru
      _
    // Predicated region
    $region22: #{tpu_custom_call.1} parent=1 // pred_check
      _
    $region23: #{tpu_custom_call.1} parent=1 // pred_check_branch
      %51 = sbr.rel (0) target = $region25
    $region24: #{tpu_custom_call.1} parent=1 // pred_region
      %52 = dma.done [#allocation7], 256
    $region25: #{tpu_custom_call.1} parent=1 // pred_fallthru
      _
    %s53 = sadd.s32 0, 0
    %s54 = sadd.s32 0, 0
    %p55 = scmp.eq.s32.totalorder 0, 0
    // Predicated region
    $region26: #{tpu_custom_call.1} parent=1 // pred_check
      %p56 = pneg %p55
    $region27: #{tpu_custom_call.1} parent=1 // pred_check_branch
      %58 = sbr.rel (%p56) target = $region29
    $region28: #{tpu_custom_call.1} parent=1 // pred_region
      %59 = vst [vmem:[#allocation2] sm:$0xff] 0.0
      %60 = vst [vmem:[#allocation2 + $0x8] sm:$0xff] 0.0
    $region29: #{tpu_custom_call.1} parent=1 // pred_fallthru
      _
    %v61 = vld [vmem:[#allocation3] sm:$0xff]
    %v62 = vld [vmem:[#allocation3 + $0x8] sm:$0xff]
    %v63 = vld [vmem:[#allocation6] sm:$0xff]
    %v64 = vld [vmem:[#allocation6 + $0x8] sm:$0xff]
    %v65 = vsub.f32 %v61, %v63
    %v66 = vsub.f32 %v62, %v64
    %v67 = vmul.f32 %v65, %v65
    %v68 = vmul.f32 %v66, %v66
    %v69 = vld [vmem:[#allocation2] sm:$0xff]
    %v70 = vld [vmem:[#allocation2 + $0x8] sm:$0xff]
    %v71 = vadd.f32 %v69, %v67
    %v72 = vadd.f32 %v70, %v68
    %73 = vst [vmem:[#allocation2] sm:$0xff] %v71
    %74 = vst [vmem:[#allocation2 + $0x8] sm:$0xff] %v72
    // Predicated region
    $region30: #{tpu_custom_call.1} parent=1 // pred_check
      %p75 = pneg %p55
    $region31: #{tpu_custom_call.1} parent=1 // pred_check_branch
      %77 = sbr.rel (%p75) target = $region33
    $region32: #{tpu_custom_call.1} parent=1 // pred_region
      %v78 = vld [vmem:[#allocation2] sm:$0xff]
      %v79 = vld [vmem:[#allocation2 + $0x8] sm:$0xff]
      %v82 = vcombine.high %v78, %v78
      %v83 = vcombine.high %v79, %v79
      %vm86 = vcmask 1043456
      %v87 = vsel %vm86, %v78, 0.0
      %v88 = vsel %vm86, %v82, 0.0
      %v89 = vadd.f32 %v87, %v88
      %v90 = vsel %vm86, %v79, 0.0
      %v91 = vadd.f32 %v89, %v90
      %v92 = vsel %vm86, %v83, 0.0
      %v93 = vadd.f32 %v91, %v92
      %94 = vadd.xlane.f32.xlu0 %v93
      %v95 = vpop.xlane.xlu0 %94
      %v96 = vrot.slane %v95, 4
      %v97 = vadd.f32 %v95, %v96
      %v98 = vrot.slane %v97, 2
      %v99 = vadd.f32 %v97, %v98
      %v100 = vrot.slane %v99, 1
      %v101 = vadd.f32 %v99, %v100
      %s102 = vtos %v101
      %v103 = vstv %s102
      %104 = vst [vmem:[#allocation8] sm:$0xff] %v103
      %v105 = vld [vmem:[%s2] sm:$0x3]
      %v106 = vld [vmem:[%s3] sm:$0x3]
      %v107 = vadd.f32 %v106, 1.0
      %v108 = vmul.f32 %v105, %v105
      %v109 = vsub.f32 %v107, %v108
      %v110 = vmul.f32 %v106, 1.442695
      %v111 = vpow.pop %v110
      %v112 = vsub.f32 %v109, %v111
      %vm113 = vcmask 254976
      %v114 = vsel %vm113, %v112, 0.0
      %115 = vadd.xlane.f32.xlu0 %v114
      %v116 = vpop.xlane.xlu0 %115
      %v117 = vrot.slane %v116, 4
      %v118 = vadd.f32 %v116, %v117
      %v119 = vrot.slane %v118, 2
      %v120 = vadd.f32 %v118, %v119
      %v121 = vrot.slane %v120, 1
      %v122 = vadd.f32 %v120, %v121
      %s123 = vtos %v122
      %v124 = vstv %s123
      %125 = vst [vmem:[#allocation9] sm:$0xff] %v124
    $region33: #{tpu_custom_call.1} parent=1 // pred_fallthru
      _
    // Predicated region
    $region34: #{tpu_custom_call.1} parent=1 // pred_check
      _
    $region35: #{tpu_custom_call.1} parent=1 // pred_check_branch
      %127 = sbr.rel (0) target = $region37
    $region36: #{tpu_custom_call.1} parent=1 // pred_region
      %s129 = ssub.s32 128, 128
      %130 = vsyncadd [#allocation5], %s129
      %s132 = sshll.u32 [#allocation8], 4
      %s133 = int_to_ptr.vmem [resolvable:$true] %s132
      %135 = dma.vmem_to_hbm [thread:$0]  %s133, 128, %s4, [#allocation5]
    $region37: #{tpu_custom_call.1} parent=1 // pred_fallthru
      _
    // Predicated region
    $region38: #{tpu_custom_call.1} parent=1 // pred_check
      _
    $region39: #{tpu_custom_call.1} parent=1 // pred_check_branch
      %137 = sbr.rel (0) target = $region41
    $region40: #{tpu_custom_call.1} parent=1 // pred_region
      %s139 = ssub.s32 128, 128
      %140 = vsyncadd [#allocation10], %s139
      %s142 = sshll.u32 [#allocation9], 4
      %s143 = int_to_ptr.vmem [resolvable:$true] %s142
      %145 = dma.vmem_to_hbm [thread:$0]  %s143, 128, %s5, [#allocation10]
    $region41: #{tpu_custom_call.1} parent=1 // pred_fallthru
      _
    // Predicated region
    $region42: #{tpu_custom_call.1} parent=1 // pred_check
      _
    $region43: #{tpu_custom_call.1} parent=1 // pred_check_branch
      %147 = sbr.rel (0) target = $region45
    $region44: #{tpu_custom_call.1} parent=1 // pred_region
      %148 = dma.done [#allocation5], 128
    $region45: #{tpu_custom_call.1} parent=1 // pred_fallthru
      _
    // Predicated region
    $region46: #{tpu_custom_call.1} parent=1 // pred_check
      _
    $region47: #{tpu_custom_call.1} parent=1 // pred_check_branch
      %150 = sbr.rel (0) target = $region49
    $region48: #{tpu_custom_call.1} parent=1 // pred_region
      %151 = dma.done [#allocation10], 128
    $region49: #{tpu_custom_call.1} parent=1 // pred_fallthru
      _
    %152 = vsyncpa [#allocation4], 1
    %153 = vsyncpa [#allocation7], 1
    %154 = vsyncpa [#allocation5], 1
    %155 = vsyncpa [#allocation10], 1

</llo_original>
